<compile_context>
chip_gen: v5e
topology: v5e:2x2
jax: 0.10.0
libtpu: 0.0.40
codegen_flags: <defaults>
</compile_context>

<pallas_src>
import functools

import jax
import jax.numpy as jnp
from jax.experimental import pallas as pl
from jax.experimental.pallas import tpu as pltpu


# ---------------------------------------------------------------------------
# Generation-aware sizing helpers
# ---------------------------------------------------------------------------
def _tpu_generation_params():
    """Return (target_block_bytes, vmem_limit_bytes, multi_core)."""
    vmem_bytes = None
    try:
        info = pltpu.get_tpu_info()
        vmem_bytes = getattr(info, "vmem_capacity_bytes", None)
    except Exception:
        vmem_bytes = None
    if vmem_bytes is None:
        kind = ""
        try:
            kind = jax.devices()[0].device_kind.lower()
        except Exception:
            pass
        if "v7" in kind:
            vmem_bytes = 64 * 1024 * 1024
        elif any(t in kind for t in ("v4", "v5", "v6")):
            vmem_bytes = 128 * 1024 * 1024
        else:
            vmem_bytes = 64 * 1024 * 1024           # conservative default
    if vmem_bytes <= 64 * 1024 * 1024:
        # v7x-class: 64 MiB VMEM per TC, two TensorCores share the grid.
        return 4 * 1024 * 1024, 48 * 1024 * 1024, True
    # v5e / v6e-class: 128 MiB VMEM, single TensorCore -> bigger blocks.
    return 12 * 1024 * 1024, 96 * 1024 * 1024, False


def _choose_block_rows(n_rows, n_cols, itemsize, *, target_block_bytes,
                       multi_core):
    """Row-block size: dtype-aware sublane multiple, ~target-sized blocks, and
    >=4 (even) grid steps on multi-TensorCore chips when rows permit."""
    sub = 8 * max(1, 4 // max(1, itemsize))         # 8 f32, 16 bf16, 32 int8
    if n_rows <= sub:
        return n_rows                               # tiny -> full extent
    cdiv = lambda a, b: -(-a // b)
    by_bytes = max(1, target_block_bytes // max(1, n_cols * itemsize))
    br = min(n_rows, 2048, by_bytes)
    br = max(sub, (br // sub) * sub)
    if multi_core:
        steps = cdiv(n_rows, br)
        if steps < 4 or steps % 2:
            want = max(4, steps + (steps % 2))
            br_new = max(sub, ((cdiv(n_rows, want) + sub - 1) // sub) * sub)
            if br_new < br:
                br = br_new
    return br


# ---------------------------------------------------------------------------
# Frozen per-channel affine (FrozenBatchNorm2d):  y = x * scale + bias
# ---------------------------------------------------------------------------
def _affine_channels_last_kernel(sb_ref, x_ref, o_ref):
    # sb_ref: (2, C) f32 (row 0 scale, row 1 bias); x/o: (block_rows, C).
    x = x_ref[...].astype(jnp.float32)
    y = x * sb_ref[0:1, :] + sb_ref[1:2, :]
    o_ref[...] = y.astype(o_ref.dtype)


def _affine_rows_kernel(sb_ref, x_ref, o_ref):
    # sb_ref: (block_rows, 2) f32 (col 0 scale, col 1 bias); x/o: (rows, H*W).
    x = x_ref[...].astype(jnp.float32)
    y = x * sb_ref[:, 0:1] + sb_ref[:, 1:2]
    o_ref[...] = y.astype(o_ref.dtype)


def frozen_batch_norm_2d(x, weight, bias, running_mean, running_var, *,
                         eps=1e-5, data_format="NCHW", donate=False):
    """y = (x - mean) / sqrt(var + eps) * w + b with frozen statistics."""
    if data_format == "NCHW":
        N, C, H, W = x.shape
    else:                                           # NHWC
        N, H, W, C = x.shape
    hw = H * W
    f32 = jnp.float32
    scale_c = weight.astype(f32) * jax.lax.rsqrt(running_var.astype(f32) + f32(eps))
    bias_c = bias.astype(f32) - running_mean.astype(f32) * scale_c

    target_bytes, vmem_limit, multi_core = _tpu_generation_params()
    itemsize = x.dtype.itemsize
    channels_last = (data_format == "NHWC") or (hw % 128 != 0 and C % 128 == 0)

    if channels_last:
        # Lane-dense along C (e.g. CLIP-ResNet 7x7/14x14/... stages).
        if data_format == "NCHW":
            # TODO(synk): producing conv should emit NHWC so this transpose
            # (an extra HBM pass) disappears.
            x_flat = x.transpose(0, 2, 3, 1).reshape(N * hw, C)
        else:
            x_flat = x.reshape(N * hw, C)
        rows, cols = x_flat.shape
        sb = jnp.stack([scale_c, bias_c], axis=0)                   # (2, C)
        block_rows = _choose_block_rows(rows, cols, itemsize,
                                        target_block_bytes=target_bytes,
                                        multi_core=multi_core)
        out_flat = pl.pallas_call(
            _affine_channels_last_kernel,
            out_shape=jax.ShapeDtypeStruct((rows, cols), x.dtype),
            grid=(pl.cdiv(rows, block_rows),),
            in_specs=[pl.BlockSpec((2, cols), lambda i: (0, 0)),
                      pl.BlockSpec((block_rows, cols), lambda i: (i, 0))],
            out_specs=pl.BlockSpec((block_rows, cols), lambda i: (i, 0)),
            input_output_aliases={1: 0} if donate else {},
            compiler_params=pltpu.CompilerParams(
                dimension_semantics=("parallel",),
                vmem_limit_bytes=vmem_limit),
            cost_estimate=pl.CostEstimate(
                flops=2 * rows * cols, transcendentals=0,
                bytes_accessed=2 * rows * cols * itemsize + 8 * cols),
        )(sb, x_flat)
        if data_format == "NCHW":
            return out_flat.reshape(N, H, W, C).transpose(0, 3, 1, 2)
        return out_flat.reshape(N, H, W, C)

    # Row-major (N*C, H*W) path (lane-dense when H*W % 128 == 0).
    rows, cols = N * C, hw
    x_flat = x.reshape(rows, cols)
    sb_rows = jnp.stack([jnp.tile(scale_c, N), jnp.tile(bias_c, N)], axis=1)
    block_rows = _choose_block_rows(rows, cols, itemsize,
                                    target_block_bytes=target_bytes,
                                    multi_core=multi_core)
    out_flat = pl.pallas_call(
        _affine_rows_kernel,
        out_shape=jax.ShapeDtypeStruct((rows, cols), x.dtype),
        grid=(pl.cdiv(rows, block_rows),),
        in_specs=[pl.BlockSpec((block_rows, 2), lambda i: (i, 0)),
                  pl.BlockSpec((block_rows, cols), lambda i: (i, 0))],
        out_specs=pl.BlockSpec((block_rows, cols), lambda i: (i, 0)),
        input_output_aliases={1: 0} if donate else {},
        compiler_params=pltpu.CompilerParams(
            dimension_semantics=("parallel",),
            vmem_limit_bytes=vmem_limit),
        cost_estimate=pl.CostEstimate(
            flops=2 * rows * cols, transcendentals=0,
            bytes_accessed=2 * rows * cols * itemsize + 8 * rows),
    )(sb_rows, x_flat)
    return out_flat.reshape(N, C, H, W)


def fold_frozen_bn_into_conv(conv_weight, conv_bias, bn_weight, bn_bias,
                             running_mean, running_var, *, eps=1e-5):
    """Zero-kernel path: fold a frozen BN that follows a conv into the conv."""
    f32 = jnp.float32
    scale = bn_weight.astype(f32) * jax.lax.rsqrt(running_var.astype(f32) + f32(eps))
    folded_w = conv_weight.astype(f32) * scale.reshape(-1, 1, 1, 1)
    if conv_bias is None:
        conv_bias = jnp.zeros_like(scale)
    folded_b = (conv_bias.astype(f32) - running_mean.astype(f32)) * scale \
        + bn_bias.astype(f32)
    return folded_w.astype(conv_weight.dtype), folded_b


# ---------------------------------------------------------------------------
# LayerNorm kernel (rows x D, lane-dense in D)
# ---------------------------------------------------------------------------
def _layer_norm_kernel(gb_ref, x_ref, o_ref, *, eps):
    x = x_ref[...].astype(jnp.float32)
    mean = jnp.mean(x, axis=-1, keepdims=True)
    xc = x - mean
    var = jnp.mean(xc * xc, axis=-1, keepdims=True)
    y = xc * jax.lax.rsqrt(var + eps) * gb_ref[0:1, :] + gb_ref[1:2, :]
    o_ref[...] = y.astype(o_ref.dtype)


def layer_norm(x, gamma, beta, *, eps=1e-5):
    rows, d = x.shape
    gb = jnp.stack([gamma.astype(jnp.float32), beta.astype(jnp.float32)], axis=0)
    sub = 8 * max(1, 4 // x.dtype.itemsize)
    block_rows = rows if rows % sub else min(rows, 512)
    return pl.pallas_call(
        functools.partial(_layer_norm_kernel, eps=eps),
        out_shape=jax.ShapeDtypeStruct((rows, d), x.dtype),
        grid=(pl.cdiv(rows, block_rows),),
        in_specs=[pl.BlockSpec((2, d), lambda i: (0, 0)),
                  pl.BlockSpec((block_rows, d), lambda i: (i, 0))],
        out_specs=pl.BlockSpec((block_rows, d), lambda i: (i, 0)),
        compiler_params=pltpu.CompilerParams(dimension_semantics=("parallel",)),
    )(gb, x)


# ---------------------------------------------------------------------------
# Fused matmul + bias (+ QuickGELU) (+ residual) kernel
# ---------------------------------------------------------------------------
def _quick_gelu(x):
    return x * (1.0 / (1.0 + jnp.exp(-1.702 * x)))


def _matmul_kernel(x_ref, w_ref, b_ref, o_ref, *, activation):
    acc = jnp.dot(x_ref[...].astype(jnp.float32), w_ref[...].astype(jnp.float32),
                  preferred_element_type=jnp.float32)
    acc = acc + b_ref[...]
    if activation == "quick_gelu":
        acc = _quick_gelu(acc)
    o_ref[...] = acc.astype(o_ref.dtype)


def _matmul_res_kernel(x_ref, w_ref, b_ref, r_ref, o_ref, *, activation):
    acc = jnp.dot(x_ref[...].astype(jnp.float32), w_ref[...].astype(jnp.float32),
                  preferred_element_type=jnp.float32)
    acc = acc + b_ref[...]
    if activation == "quick_gelu":
        acc = _quick_gelu(acc)
    acc = acc + r_ref[...].astype(jnp.float32)
    o_ref[...] = acc.astype(o_ref.dtype)


def linear(x, w, b=None, *, activation=None, residual=None, out_dtype=None):
    """y = act(x @ w + b) (+ residual), one fused Pallas call.

    x: (M, K); w: (K, N); b: (N,) or None; residual: (M, N) or None.
    TODO(synk): for full ViT-B/32 widths (K up to 3072) switch to the k-looped
    accumulator matmul; at these demo sizes a single K block is optimal.
    """
    M, K = x.shape
    K2, N = w.shape
    assert K == K2
    out_dtype = out_dtype or x.dtype
    if b is None:
        b = jnp.zeros((N,), jnp.float32)
    b2 = b.astype(jnp.float32).reshape(1, N)

    sub = 8 * max(1, 4 // x.dtype.itemsize)
    bm = M if M % sub else min(M, 512)
    grid = (pl.cdiv(M, bm),)

    x_spec = pl.BlockSpec((bm, K), lambda i: (i, 0))
    w_spec = pl.BlockSpec((K, N), lambda i: (0, 0))
    b_spec = pl.BlockSpec((1, N), lambda i: (0, 0))
    o_spec = pl.BlockSpec((bm, N), lambda i: (i, 0))
    cost = pl.CostEstimate(flops=2 * M * K * N, transcendentals=0,
                           bytes_accessed=(M * K + K * N + M * N) * 4)
    params = pltpu.CompilerParams(dimension_semantics=("parallel",))

    if residual is None:
        return pl.pallas_call(
            functools.partial(_matmul_kernel, activation=activation),
            out_shape=jax.ShapeDtypeStruct((M, N), out_dtype),
            grid=grid, in_specs=[x_spec, w_spec, b_spec], out_specs=o_spec,
            compiler_params=params, cost_estimate=cost,
        )(x, w, b2)
    r_spec = pl.BlockSpec((bm, N), lambda i: (i, 0))
    return pl.pallas_call(
        functools.partial(_matmul_res_kernel, activation=activation),
        out_shape=jax.ShapeDtypeStruct((M, N), out_dtype),
        grid=grid, in_specs=[x_spec, w_spec, b_spec, r_spec], out_specs=o_spec,
        compiler_params=params, cost_estimate=cost,
    )(x, w, b2, residual)


# ---------------------------------------------------------------------------
# Attention kernel: one (batch, head) per grid step
# ---------------------------------------------------------------------------
def _attention_kernel(q_ref, k_ref, v_ref, o_ref, *, scale):
    _, S, hd = q_ref.shape
    q = q_ref[...].reshape(S, hd).astype(jnp.float32) * scale
    k = k_ref[...].reshape(S, hd).astype(jnp.float32)
    v = v_ref[...].reshape(S, hd).astype(jnp.float32)
    s = jax.lax.dot_general(q, k, (((1,), (1,)), ((), ())),
                            preferred_element_type=jnp.float32)      # (S, S)
    s = s - jnp.max(s, axis=-1, keepdims=True)
    p = jnp.exp(s)
    p = p / jnp.sum(p, axis=-1, keepdims=True)
    o = jnp.dot(p, v, preferred_element_type=jnp.float32)
    o_ref[...] = o.reshape(1, S, hd).astype(o_ref.dtype)


def multi_head_attention(q, k, v):
    """q, k, v: (B*heads, S, hd) -> (B*heads, S, hd).
    TODO(synk): for real CLIP sequence lengths use the online-softmax
    flash-attention tiling; whole-head blocks are fine at demo sizes."""
    BH, S, hd = q.shape
    scale = 1.0 / float(hd) ** 0.5
    spec = pl.BlockSpec((1, S, hd), lambda i: (i, 0, 0))
    return pl.pallas_call(
        functools.partial(_attention_kernel, scale=scale),
        out_shape=jax.ShapeDtypeStruct((BH, S, hd), q.dtype),
        grid=(BH,),
        in_specs=[spec, spec, spec],
        out_specs=spec,
        compiler_params=pltpu.CompilerParams(dimension_semantics=("parallel",)),
    )(q, k, v)


# ---------------------------------------------------------------------------
# CLIP VisionTransformer (small config) built from the kernels above
# ---------------------------------------------------------------------------
def init_clip_vit_params(key, *, in_chans=3, image_size=32, patch_size=8,
                         width=128, layers=2, heads=4, output_dim=64):
    n_patches = (image_size // patch_size) ** 2
    patch_dim = in_chans * patch_size * patch_size
    keys = jax.random.split(key, 6 + layers)

    def nrm(k, shape, s):
        return s * jax.random.normal(k, shape, dtype=jnp.float32)

    def ln_init(k):
        k1, k2 = jax.random.split(k)
        return (1.0 + 0.1 * jax.random.normal(k1, (width,), dtype=jnp.float32),
                0.1 * jax.random.normal(k2, (width,), dtype=jnp.float32))

    p = {
        "patch_w": nrm(keys[0], (patch_dim, width), patch_dim ** -0.5),
        "class_embedding": nrm(keys[1], (width,), width ** -0.5),
        "positional_embedding": nrm(keys[2], (n_patches + 1, width), width ** -0.5),
        "proj": nrm(keys[3], (width, output_dim), width ** -0.5),
        "ln_pre": ln_init(keys[4]),
        "ln_post": ln_init(keys[5]),
        "blocks": [],
    }
    for layer in range(layers):
        ks = jax.random.split(keys[6 + layer], 8)
        p["blocks"].append({
            "ln1": ln_init(ks[6]),
            "ln2": ln_init(ks[7]),
            "qkv_w": nrm(ks[0], (width, 3 * width), width ** -0.5),
            "qkv_b": jnp.zeros((3 * width,), jnp.float32),
            "out_w": nrm(ks[1], (width, width), width ** -0.5),
            "out_b": jnp.zeros((width,), jnp.float32),
            "fc_w": nrm(ks[2], (width, 4 * width), width ** -0.5),
            "fc_b": nrm(ks[3], (4 * width,), 0.02),
            "proj_w": nrm(ks[4], (4 * width, width), (4 * width) ** -0.5),
            "proj_b": nrm(ks[5], (width,), 0.02),
        })
    return p


def clip_vit_forward(x_img, p, *, patch_size, heads):
    """CLIP VisionTransformer forward on NCHW images using Pallas kernels."""
    N, C, H, W = x_img.shape
    width = p["class_embedding"].shape[0]
    hd = width // heads
    gh, gw = H // patch_size, W // patch_size

    # conv1 (kernel == stride == patch) == patch gather + matmul (no bias).
    patches = x_img.reshape(N, C, gh, patch_size, gw, patch_size)
    patches = patches.transpose(0, 2, 4, 1, 3, 5).reshape(
        N * gh * gw, C * patch_size * patch_size)
    tok = linear(patches, p["patch_w"]).reshape(N, gh * gw, width)

    cls = jnp.broadcast_to(p["class_embedding"][None, None, :], (N, 1, width))
    h = jnp.concatenate([cls, tok], axis=1) + p["positional_embedding"][None]
    S = h.shape[1]
    h = h.reshape(N * S, width)
    h = layer_norm(h, *p["ln_pre"])

    for blk in p["blocks"]:
        # Pre-LN multi-head self-attention; residual fused into out-proj store.
        y = layer_norm(h, *blk["ln1"])
        qkv = linear(y, blk["qkv_w"], blk["qkv_b"]).reshape(N, S, 3, heads, hd)
        q = qkv[:, :, 0].transpose(0, 2, 1, 3).reshape(N * heads, S, hd)
        k = qkv[:, :, 1].transpose(0, 2, 1, 3).reshape(N * heads, S, hd)
        v = qkv[:, :, 2].transpose(0, 2, 1, 3).reshape(N * heads, S, hd)
        o = multi_head_attention(q, k, v)
        o = o.reshape(N, heads, S, hd).transpose(0, 2, 1, 3).reshape(N * S, width)
        h = linear(o, blk["out_w"], blk["out_b"], residual=h)

        # Pre-LN MLP (QuickGELU); residual fused into the second matmul.
        y = layer_norm(h, *blk["ln2"])
        y = linear(y, blk["fc_w"], blk["fc_b"], activation="quick_gelu")
        h = linear(y, blk["proj_w"], blk["proj_b"], residual=h)

    h = h.reshape(N, S, width)
    cls_out = layer_norm(h[:, 0, :], *p["ln_post"])
    return linear(cls_out, p["proj"])                       # (N, output_dim)


def clip_backbone_forward(x, params, *, image_size, patch_size, heads,
                          text_features=None):
    """Mirror of CLIPBackbone.forward: interpolate -> visual -> {'0': feats}.

    TODO(synk): clip.tokenize + the text transformer (encode_text) are not
    translated; pass precomputed `text_features` (output_dim,) instead.
    """
    N, C = x.shape[:2]
    x = jax.image.resize(x, (N, C, image_size, image_size), method="nearest")
    feats = clip_vit_forward(x, params, patch_size=patch_size, heads=heads)
    if text_features is not None:
        feats = feats + jnp.broadcast_to(text_features[None, :], feats.shape)
    return {"0": feats}


# ---------------------------------------------------------------------------
# Pure-JAX references
# ---------------------------------------------------------------------------
def _frozen_bn_reference(x, weight, bias, running_mean, running_var, eps=1e-5):
    scale = (weight * jax.lax.rsqrt(running_var + eps)).reshape(1, -1, 1, 1)
    shift = bias.reshape(1, -1, 1, 1) - running_mean.reshape(1, -1, 1, 1) * scale
    return x * scale + shift


def _clip_vit_reference(x_img, p, *, patch_size, heads):
    hp = jax.lax.Precision.HIGHEST
    N, C, H, W = x_img.shape
    width = p["class_embedding"].shape[0]
    hd = width // heads
    gh, gw = H // patch_size, W // patch_size

    def ln(x, g, b, eps=1e-5):
        m = jnp.mean(x, -1, keepdims=True)
        v = jnp.mean((x - m) ** 2, -1, keepdims=True)
        return (x - m) * jax.lax.rsqrt(v + eps) * g + b

    patches = x_img.reshape(N, C, gh, patch_size, gw, patch_size)
    patches = patches.transpose(0, 2, 4, 1, 3, 5).reshape(N * gh * gw, -1)
    tok = jnp.dot(patches, p["patch_w"], precision=hp).reshape(N, gh * gw, width)
    cls = jnp.broadcast_to(p["class_embedding"][None, None, :], (N, 1, width))
    h = jnp.concatenate([cls, tok], axis=1) + p["positional_embedding"][None]
    S = h.shape[1]
    h = ln(h, *p["ln_pre"])
    for blk in p["blocks"]:
        y = ln(h, *blk["ln1"])
        qkv = (jnp.dot(y, blk["qkv_w"], precision=hp) + blk["qkv_b"]
               ).reshape(N, S, 3, heads, hd)
        q = qkv[:, :, 0].transpose(0, 2, 1, 3)
        k = qkv[:, :, 1].transpose(0, 2, 1, 3)
        v = qkv[:, :, 2].transpose(0, 2, 1, 3)
        s = jnp.einsum("nhqd,nhkd->nhqk", q, k, precision=hp) / hd ** 0.5
        a = jax.nn.softmax(s, axis=-1)
        o = jnp.einsum("nhqk,nhkd->nhqd", a, v, precision=hp)
        o = o.transpose(0, 2, 1, 3).reshape(N, S, width)
        h = h + jnp.dot(o, blk["out_w"], precision=hp) + blk["out_b"]
        y = ln(h, *blk["ln2"])
        y = jnp.dot(y, blk["fc_w"], precision=hp) + blk["fc_b"]
        y = y * jax.nn.sigmoid(1.702 * y)
        h = h + jnp.dot(y, blk["proj_w"], precision=hp) + blk["proj_b"]
    cls_out = ln(h[:, 0, :], *p["ln_post"])
    return jnp.dot(cls_out, p["proj"], precision=hp)


# ---------------------------------------------------------------------------
if __name__ == "__main__":
    key = jax.random.PRNGKey(0)
    k_img, k_par, k_bn, k_txt = jax.random.split(key, 4)

    # --- CLIPBackbone forward (small ViT config) -----------------------------
    B, image_size, patch_size = 2, 32, 8
    width, layers, heads, out_dim = 128, 2, 4, 64
    x = jax.random.normal(k_img, (B, 3, 16, 16), dtype=jnp.float32)
    params = init_clip_vit_params(k_par, image_size=image_size,
                                  patch_size=patch_size, width=width,
                                  layers=layers, heads=heads,
                                  output_dim=out_dim)

    feats = clip_backbone_forward(x, params, image_size=image_size,
                                  patch_size=patch_size, heads=heads)
    feats = jax.block_until_ready(feats)
    assert feats["0"].shape == (B, out_dim)

    x_rs = jax.image.resize(x, (B, 3, image_size, image_size), method="nearest")
    ref_feats = _clip_vit_reference(x_rs, params, patch_size=patch_size,
                                    heads=heads)
    assert jnp.allclose(feats["0"], ref_feats, atol=2e-2, rtol=2e-2), \
        "ViT forward mismatch"

    # Text-conditioned path (precomputed text features; tokenizer is a TODO).
    txt = jax.random.normal(k_txt, (out_dim,), dtype=jnp.float32)
    feats_txt = clip_backbone_forward(x, params, image_size=image_size,
                                      patch_size=patch_size, heads=heads,
                                      text_features=txt)
    feats_txt = jax.block_until_ready(feats_txt)
    assert jnp.allclose(feats_txt["0"], ref_feats + txt[None, :],
                        atol=2e-2, rtol=2e-2), "text-conditioned mismatch"

    # --- Frozen per-channel affine (frozen CLIP-ResNet norm path) ------------
    kx, kw, kb, km, kvar, kx2 = jax.random.split(k_bn, 6)
    eps = 1e-5

    # Row-major (N*C, H*W) layout: H*W = 256 is lane dense.
    N, C, H, W = 2, 4, 16, 16
    xb = jax.random.normal(kx, (N, C, H, W), dtype=jnp.float32)
    w = jax.random.normal(kw, (C,), dtype=jnp.float32)
    b = jax.random.normal(kb, (C,), dtype=jnp.float32)
    rm = jax.random.normal(km, (C,), dtype=jnp.float32)
    rv = jax.random.uniform(kvar, (C,), dtype=jnp.float32, minval=0.5, maxval=2.0)
    out = jax.block_until_ready(frozen_batch_norm_2d(xb, w, b, rm, rv, eps=eps))
    ref = _frozen_bn_reference(xb, w, b, rm, rv, eps)
    assert jnp.allclose(out, ref, atol=1e-5, rtol=1e-5), "frozen-BN NCHW mismatch"

    # Channels-last layout: H*W = 49 (not lane friendly), C = 128, bf16.
    N2, H2, W2, C2 = 2, 7, 7, 128
    xcl = jax.random.normal(kx2, (N2, H2, W2, C2), dtype=jnp.float32
                            ).astype(jnp.bfloat16)
    w2 = jax.random.normal(kw, (C2,), dtype=jnp.float32)
    b2 = jax.random.normal(kb, (C2,), dtype=jnp.float32)
    rm2 = jax.random.normal(km, (C2,), dtype=jnp.float32)
    rv2 = jax.random.uniform(kvar, (C2,), dtype=jnp.float32, minval=0.5, maxval=2.0)
    out2 = jax.block_until_ready(
        frozen_batch_norm_2d(xcl, w2, b2, rm2, rv2, eps=eps, data_format="NHWC"))
    assert out2.dtype == jnp.bfloat16
    ref2 = _frozen_bn_reference(xcl.astype(jnp.float32).transpose(0, 3, 1, 2),
                                w2, b2, rm2, rv2, eps).transpose(0, 2, 3, 1)
    assert jnp.allclose(out2.astype(jnp.float32), ref2, atol=1e-1, rtol=5e-2), \
        "frozen-BN NHWC bf16 mismatch"

    # Donated variant (x aliased to the output) under jit.
    bn_jit = jax.jit(functools.partial(frozen_batch_norm_2d, eps=eps, donate=True))
    out3 = jax.block_until_ready(bn_jit(xb, w, b, rm, rv))
    assert jnp.allclose(out3, ref, atol=1e-5, rtol=1e-5), "frozen-BN donated mismatch"

    # Zero-kernel path: fold the frozen affine into a preceding 1x1 conv.
    conv_w = jax.random.normal(kw, (C, 3, 1, 1), dtype=jnp.float32) * 0.5
    conv_b = jax.random.normal(kb, (C,), dtype=jnp.float32) * 0.1
    xi = jax.random.normal(kx, (N, 3, H, W), dtype=jnp.float32)

    def conv1x1(x_, w_, b_):
        return jnp.einsum("nchw,oc->nohw", x_, w_[:, :, 0, 0]) \
            + b_.reshape(1, -1, 1, 1)

    y_bn = frozen_batch_norm_2d(conv1x1(xi, conv_w, conv_b), w, b, rm, rv, eps=eps)
    fw, fb = fold_frozen_bn_into_conv(conv_w, conv_b, w, b, rm, rv, eps=eps)
    y_fold = conv1x1(xi, fw, fb)
    y_bn = jax.block_until_ready(y_bn)
    assert jnp.allclose(y_bn, y_fold, atol=1e-4, rtol=1e-4), "conv-fold mismatch"

    print("KERNEL_OK")
</pallas_src>

<mosaic_0001>
module attributes {stable_mosaic.version = 11 : i64} {
  func.func @_matmul_kernel(%arg0: i32, %arg1: memref<32x192xf32, #tpu.memory_space<vmem>>, %arg2: memref<192x128xf32, #tpu.memory_space<vmem>>, %arg3: memref<1x128xf32, #tpu.memory_space<vmem>>, %arg4: memref<32x128xf32, #tpu.memory_space<vmem>>) attributes {dimension_semantics = [#tpu.dimension_semantics<parallel>], iteration_bounds = array<i64: 1>, scalar_prefetch = 0 : i64, scratch_operands = 0 : i64, tpu.core_type = #tpu.core_type<tc>, window_params = [{transform_indices = @transform_0, window_bounds = array<i64: 32, 192>}, {pipeline_mode = #tpu.pipeline_mode<synchronous>, transform_indices = @transform_1, window_bounds = array<i64: 192, 128>}, {pipeline_mode = #tpu.pipeline_mode<synchronous>, transform_indices = @transform_2, window_bounds = array<i64: 1, 128>}, {transform_indices = @transform_3, window_bounds = array<i64: 32, 128>}]} {
    %c0 = arith.constant 0 : index
    %c0_0 = arith.constant 0 : index
    %0 = vector.load %arg1[%c0, %c0_0] : memref<32x192xf32, #tpu.memory_space<vmem>>, vector<32x192xf32>
    %c0_1 = arith.constant 0 : index
    %c0_2 = arith.constant 0 : index
    %1 = vector.load %arg2[%c0_1, %c0_2] : memref<192x128xf32, #tpu.memory_space<vmem>>, vector<192x128xf32>
    %cst = arith.constant dense<0.000000e+00> : vector<32x128xf32>
    %2 = tpu.matmul %0, %1, %cst {dimension_numbers = #tpu.dot_dimension_numbers<[1], [0], [0], [1], [0, 0, 1, 1], [], []>} : vector<32x192xf32>, vector<192x128xf32>, vector<32x128xf32> -> vector<32x128xf32>
    %c0_3 = arith.constant 0 : index
    %c0_4 = arith.constant 0 : index
    %3 = vector.load %arg3[%c0_3, %c0_4] : memref<1x128xf32, #tpu.memory_space<vmem>>, vector<1x128xf32>
    %4 = vector.broadcast %3 : vector<1x128xf32> to vector<32x128xf32>
    %5 = arith.addf %2, %4 : vector<32x128xf32>
    %c0_5 = arith.constant 0 : index
    %c0_6 = arith.constant 0 : index
    %6 = vector.load %arg4[%c0_5, %c0_6] : memref<32x128xf32, #tpu.memory_space<vmem>>, vector<32x128xf32>
    tpu.vector_store %arg4[%c0_5, %c0_6], %5 {strides = array<i32>} : memref<32x128xf32, #tpu.memory_space<vmem>>, vector<32x128xf32>,
    return
  }
  func.func @transform_0(%arg0: i32) -> (i32, i32) {
    %c0_i32 = arith.constant 0 : i32
    %c0_i32_0 = arith.constant 0 : i32
    return %arg0, %c0_i32 : i32, i32
  }
  func.func @transform_1(%arg0: i32) -> (i32, i32) {
    %c0_i32 = arith.constant 0 : i32
    %c0_i32_0 = arith.constant 0 : i32
    %c0_i32_1 = arith.constant 0 : i32
    return %c0_i32, %c0_i32_0 : i32, i32
  }
  func.func @transform_2(%arg0: i32) -> (i32, i32) {
    %c0_i32 = arith.constant 0 : i32
    %c0_i32_0 = arith.constant 0 : i32
    %c0_i32_1 = arith.constant 0 : i32
    return %c0_i32, %c0_i32_0 : i32, i32
  }
  func.func @transform_3(%arg0: i32) -> (i32, i32) {
    %c0_i32 = arith.constant 0 : i32
    %c0_i32_0 = arith.constant 0 : i32
    return %arg0, %c0_i32 : i32, i32
  }
}

</mosaic_0001>

<llo_original>
// kernel: tpu_custom_call.1
$region0: #{tpu_custom_call.1}
  #allocation0 [shape = 'u32[]', space=smem, size = 0x4, offset = 0x4, fixed_abs, tag = 'smem constant byte address 0x4 - core index']
  #allocation1 [shape = 'u32[72,128]{1,0:T(1,128)}', space=vmem, size = 0x9000, scoped, tag = 'internal scratch']
  %s0 = inlined_call_operand.hbm [shape: f32[32,192], index: 0, kind: input, shape index: {}]
  %s1 = inlined_call_operand.hbm [shape: f32[192,128], index: 1, kind: input, shape index: {}]
  %s2 = inlined_call_operand.vmem [shape: f32[1,128], index: 2, kind: input, shape index: {}]
  %s3 = inlined_call_operand.hbm [shape: f32[32,128], index: 3, kind: output, shape index: {}]
  %s4 = sld [smem:[#allocation0]]
  $region30: #{tpu_custom_call.1} parent=0
    _
  %s6 = ssub.s32 1, %s4
  %s7 = scalar_select 0, %s6, %s4
  $region1: #{tpu_custom_call.1} parent=0
    #allocation2 [shape = 'u8[32768]{0}', space=vmem, size = 0x8000, scoped, tag = 'input window, operand 0, single buffered']
    #allocation3 [shape = 's32[1]{0}', space=sflag, size = 0x4, scoped, tag = 'scoped memory for tpu_custom_call.1']
    #allocation4 [shape = 's32[1]{0}', space=sflag, size = 0x4, scoped, tag = 'scoped memory for tpu_custom_call.1']
    #allocation5 [shape = 'u8[98304]{0}', space=vmem, size = 0x18000, scoped, tag = 'input window, operand 1, single buffered']
    #allocation6 [shape = 's32[1]{0}', space=sflag, size = 0x4, scoped, tag = 'scoped memory for tpu_custom_call.1']
    #allocation7 [shape = 'u8[16384]{0}', space=vmem, size = 0x4000, scoped, tag = 'output window, operand 0, single buffered']
    %8 = vsyncpa [#allocation3], 0
    %9 = vsyncpa [#allocation6], 0
    %10 = vsyncpa [#allocation4], 0
    // Predicated region
    $region2: #{tpu_custom_call.1} parent=1 // pred_check
      _
    $region3: #{tpu_custom_call.1} parent=1 // pred_check_branch
      %12 = sbr.rel (0) target = $region5
    $region4: #{tpu_custom_call.1} parent=1 // pred_region
      %14 = vsyncadd [#allocation3], 0
      %s15 = sshll.u32 %s0, 4
      %s16 = int_to_ptr.hbm [resolvable:$true] %s15
      %s17 = sshll.u32 [#allocation2], 4
      %s18 = int_to_ptr.vmem [resolvable:$true] %s17
      %23 = dma.hbm_to_vmem [thread:$0]  %s16, 1024, %s18, [#allocation3], 256, 256, 16
    $region5: #{tpu_custom_call.1} parent=1 // pred_fallthru
      _
    // Predicated region
    $region6: #{tpu_custom_call.1} parent=1 // pred_check
      _
    $region7: #{tpu_custom_call.1} parent=1 // pred_check_branch
      %25 = sbr.rel (0) target = $region9
    $region8: #{tpu_custom_call.1} parent=1 // pred_region
      %27 = vsyncadd [#allocation6], 0
      %s28 = sshll.u32 %s1, 4
      %s29 = int_to_ptr.hbm [resolvable:$true] %s28
      %s30 = sshll.u32 [#allocation5], 4
      %s31 = int_to_ptr.vmem [resolvable:$true] %s30
      %36 = dma.hbm_to_vmem [thread:$0]  %s29, 3072, %s31, [#allocation6], 128, 128, 8
    $region9: #{tpu_custom_call.1} parent=1 // pred_fallthru
      _
    // Predicated region
    $region10: #{tpu_custom_call.1} parent=1 // pred_check
      _
    $region11: #{tpu_custom_call.1} parent=1 // pred_check_branch
      %38 = sbr.rel (0) target = $region13
    $region12: #{tpu_custom_call.1} parent=1 // pred_region
      _
    $region13: #{tpu_custom_call.1} parent=1 // pred_fallthru
      _
    // Predicated region
    $region14: #{tpu_custom_call.1} parent=1 // pred_check
      _
    $region15: #{tpu_custom_call.1} parent=1 // pred_check_branch
      %40 = sbr.rel (0) target = $region17
    $region16: #{tpu_custom_call.1} parent=1 // pred_region
      %42 = dma.done [#allocation3], 1024
    $region17: #{tpu_custom_call.1} parent=1 // pred_fallthru
      _
    // Predicated region
    $region18: #{tpu_custom_call.1} parent=1 // pred_check
      _
    $region19: #{tpu_custom_call.1} parent=1 // pred_check_branch
      %44 = sbr.rel (0) target = $region21
    $region20: #{tpu_custom_call.1} parent=1 // pred_region
      %46 = dma.done [#allocation6], 3072
    $region21: #{tpu_custom_call.1} parent=1 // pred_fallthru
      _
    %v47 = vld [vmem:[#allocation2] sm:$0xff]
    %v48 = vld [vmem:[#allocation2 + $0x8] sm:$0xff]
    %v49 = vld [vmem:[#allocation2 + $0x10] sm:$0xff]
    %v50 = vld [vmem:[#allocation2 + $0x18] sm:$0xff]
    %v51 = vld [vmem:[#allocation2 + $0x20] sm:$0xff]
    %v52 = vld [vmem:[#allocation2 + $0x28] sm:$0xff]
    %v53 = vld [vmem:[#allocation2 + $0x30] sm:$0xff]
    %v54 = vld [vmem:[#allocation2 + $0x38] sm:$0xff]
    %v55 = vld [vmem:[#allocation5] sm:$0xff]
    %v56 = vld [vmem:[#allocation5 + $0x8] sm:$0xff]
    %v57 = vld [vmem:[#allocation5 + $0x10] sm:$0xff]
    %v58 = vld [vmem:[#allocation5 + $0x18] sm:$0xff]
    %v59 = vld [vmem:[#allocation5 + $0x20] sm:$0xff]
    %v60 = vld [vmem:[#allocation5 + $0x28] sm:$0xff]
    %v61 = vld [vmem:[#allocation5 + $0x30] sm:$0xff]
    %v62 = vld [vmem:[#allocation5 + $0x38] sm:$0xff]
    %v63 = vld [vmem:[#allocation5 + $0x40] sm:$0xff]
    %v64 = vld [vmem:[#allocation5 + $0x48] sm:$0xff]
    %v65 = vld [vmem:[#allocation5 + $0x50] sm:$0xff]
    %v66 = vld [vmem:[#allocation5 + $0x58] sm:$0xff]
    %v67 = vld [vmem:[#allocation5 + $0x60] sm:$0xff]
    %v68 = vld [vmem:[#allocation5 + $0x68] sm:$0xff]
    %v69 = vld [vmem:[#allocation5 + $0x70] sm:$0xff]
    %v70 = vld [vmem:[#allocation5 + $0x78] sm:$0xff]
    %v71 = vld [vmem:[#allocation5 + $0x80] sm:$0xff]
    %v72 = vld [vmem:[#allocation5 + $0x88] sm:$0xff]
    %v73 = vld [vmem:[#allocation5 + $0x90] sm:$0xff]
    %v74 = vld [vmem:[#allocation5 + $0x98] sm:$0xff]
    %v75 = vld [vmem:[#allocation5 + $0xa0] sm:$0xff]
    %v76 = vld [vmem:[#allocation5 + $0xa8] sm:$0xff]
    %v77 = vld [vmem:[#allocation5 + $0xb0] sm:$0xff]
    %v78 = vld [vmem:[#allocation5 + $0xb8] sm:$0xff]
    %v79 = vld [vmem:[%s2] sm:$0x1]
    %v81 = vperm.slane %v79, 0
    %vm83 = vcmask 523264
    %v85 = vsel %vm83, %v48, 0
    %v88 = vsel %vm83, %v50, 0
    %v91 = vsel %vm83, %v52, 0
    %v94 = vsel %vm83, %v54, 0
    %96 = vmatpush.msra.mxu0 %v70
    %97 = vmatpush.msra.mxu0 %v69
    %98 = vmatpush.msra.mxu0 %v68
    %99 = vmatpush.msra.mxu0 %v67
    %100 = vmatpush.msra.mxu0 %v66
    %101 = vmatpush.msra.mxu0 %v65
    %102 = vmatpush.msra.mxu0 %v64
    %103 = vmatpush.msra.mxu0 %v63
    %104 = vmatpush.msra.mxu0 %v62
    %105 = vmatpush.msra.mxu0 %v61
    %106 = vmatpush.msra.mxu0 %v60
    %107 = vmatpush.msra.mxu0 %v59
    %108 = vmatpush.msra.mxu0 %v58
    %109 = vmatpush.msra.mxu0 %v57
    %110 = vmatpush.msra.mxu0 %v56
    %111 = vmatpush.msra.mxu0 %v55
    %112 = vmatmul.f32.gmra.mxu0 %v47
    %v113 = vpop.f32.mrf.mxu0
    %v114 = vadd.f32 %v81, %v113
    %115 = vmatmul.f32.gmra.mxu0 %v49
    %v116 = vpop.f32.mrf.mxu0
    %v117 = vadd.f32 %v81, %v116
    %118 = vmatmul.f32.gmra.mxu0 %v51
    %v119 = vpop.f32.mrf.mxu0
    %v120 = vadd.f32 %v81, %v119
    %121 = vmatmul.f32.gmra.mxu0 %v53
    %v122 = vpop.f32.mrf.mxu0
    %v123 = vadd.f32 %v81, %v122
    %124 = vdwg.mxu0
    %125 = vmatpush.msra.mxu0 0.0
    %126 = vmatpush.msra.mxu0 0.0
    %127 = vmatpush.msra.mxu0 0.0
    %128 = vmatpush.msra.mxu0 0.0
    %129 = vmatpush.msra.mxu0 0.0
    %130 = vmatpush.msra.mxu0 0.0
    %131 = vmatpush.msra.mxu0 0.0
    %132 = vmatpush.msra.mxu0 0.0
    %133 = vmatpush.msra.mxu0 %v78
    %134 = vmatpush.msra.mxu0 %v77
    %135 = vmatpush.msra.mxu0 %v76
    %136 = vmatpush.msra.mxu0 %v75
    %137 = vmatpush.msra.mxu0 %v74
    %138 = vmatpush.msra.mxu0 %v73
    %139 = vmatpush.msra.mxu0 %v72
    %140 = vmatpush.msra.mxu0 %v71
    %141 = vmatmul.f32.gmra.mxu0 %v85
    %v142 = vpop.f32.mrf.mxu0
    %v143 = vadd.f32 %v114, %v142
    %144 = vmatmul.f32.gmra.mxu0 %v88
    %v145 = vpop.f32.mrf.mxu0
    %v146 = vadd.f32 %v117, %v145
    %147 = vmatmul.f32.gmra.mxu0 %v91
    %v148 = vpop.f32.mrf.mxu0
    %v149 = vadd.f32 %v120, %v148
    %150 = vmatmul.f32.gmra.mxu0 %v94
    %v151 = vpop.f32.mrf.mxu0
    %v152 = vadd.f32 %v123, %v151
    %153 = vdwg.mxu0
    %154 = vst [vmem:[#allocation7] sm:$0xff] %v143
    %155 = vst [vmem:[#allocation7 + $0x8] sm:$0xff] %v146
    %156 = vst [vmem:[#allocation7 + $0x10] sm:$0xff] %v149
    %157 = vst [vmem:[#allocation7 + $0x18] sm:$0xff] %v152
    // Predicated region
    $region22: #{tpu_custom_call.1} parent=1 // pred_check
      _
    $region23: #{tpu_custom_call.1} parent=1 // pred_check_branch
      %159 = sbr.rel (0) target = $region25
    $region24: #{tpu_custom_call.1} parent=1 // pred_region
      %161 = vsyncadd [#allocation4], 0
      %s162 = sshll.u32 [#allocation7], 4
      %s163 = int_to_ptr.vmem [resolvable:$true] %s162
      %s164 = sshll.u32 %s3, 4
      %s165 = int_to_ptr.hbm [resolvable:$true] %s164
      %170 = dma.vmem_to_hbm [thread:$0]  %s163, 512, %s165, [#allocation4], 128, 128, 8
    $region25: #{tpu_custom_call.1} parent=1 // pred_fallthru
      _
    // Predicated region
    $region26: #{tpu_custom_call.1} parent=1 // pred_check
      _
    $region27: #{tpu_custom_call.1} parent=1 // pred_check_branch
      %172 = sbr.rel (0) target = $region29
    $region28: #{tpu_custom_call.1} parent=1 // pred_region
      %174 = dma.done [#allocation4], 512
    $region29: #{tpu_custom_call.1} parent=1 // pred_fallthru
      _
    %175 = vsyncpa [#allocation3], 1
    %176 = vsyncpa [#allocation6], 1
    %177 = vsyncpa [#allocation4], 1

</llo_original>
